<compile_context>
chip_gen: v7x
topology: tpu7x:2x2x1
jax: 0.10.0
libtpu: 0.0.40
codegen_flags: <defaults>
</compile_context>

<pallas_src>
import functools

import jax
import jax.numpy as jnp
import numpy as np
from jax.experimental import pallas as pl
from jax.experimental.pallas import tpu as pltpu


def _loss_partials_kernel(w_ref, tg_ref, mean_ref, lv_ref, mk_ref, acc_ref,
                          *, hw, rows, needs_valid):
    """Accumulates lane-dense partial sums for the 5 global reductions.

    acc[0] : sum_pix mask * sum_m[(exp(-lv)*|mean - tgt_m| + lv) * w_m]
    acc[1] : sum_pix mask * (-lv) * mask_oor
    acc[2] : sum_pix sum_m w_m
    acc[3] : sum_pix mask_oor
    acc[4] : sum_pix mask
    Each partial lives on an (rows, 128) plane; the tiny cross-lane reduce is
    done once in the JAX glue, so the per-step work is VPU/EUP only.
    """
    t = pl.program_id(1)

    @pl.when(t == 0)
    def _init():
        acc_ref[...] = jnp.zeros_like(acc_ref)

    w = w_ref[...].astype(jnp.float32)        # (B, M, S, 128)
    tg = tg_ref[...].astype(jnp.float32)      # (B, M, S, 128)
    mean = mean_ref[...].astype(jnp.float32)  # (B, S, 128)
    lv = lv_ref[...].astype(jnp.float32)      # (B, S, 128)
    mk = mk_ref[...].astype(jnp.float32)      # (B, S, 128)

    if needs_valid:
        # Mask lane-padding / partial-tile garbage by global pixel index.
        c = pl.program_id(0)
        steps = pl.num_programs(1)
        row0 = (c * steps + t) * rows
        rid = jax.lax.broadcasted_iota(jnp.int32, (rows, 128), 0)
        lid = jax.lax.broadcasted_iota(jnp.int32, (rows, 128), 1)
        valid = ((row0 + rid) * 128 + lid) < hw          # (S, 128) bool
        validf = valid.astype(jnp.float32)
        w = jnp.where(valid[None, None], w, 0.0)
        tg = jnp.where(valid[None, None], tg, 0.0)
        mean = jnp.where(valid[None], mean, 0.0)
        lv = jnp.where(valid[None], lv, 0.0)
        mk = jnp.where(valid[None], mk, 0.0)

    exp_neg_lv = jnp.exp(-lv)                                    # (B, S, 128) EUP
    l_m = (exp_neg_lv[:, None] * jnp.abs(mean[:, None] - tg)
           + lv[:, None]) * w                                    # (B, M, S, 128)
    l_pix = jnp.sum(l_m, axis=1)                                 # (B, S, 128)
    w_pix = jnp.sum(w, axis=1)                                   # (B, S, 128)
    m_oor = (w_pix < 0.01).astype(jnp.float32)                   # (B, S, 128)
    if needs_valid:
        m_oor = m_oor * validf[None]

    # Accumulate lane-dense partials; sums over B are vreg-wise VPU adds.
    acc_ref[0] += jnp.sum(l_pix * mk, axis=0)
    acc_ref[1] += jnp.sum((-lv) * m_oor * mk, axis=0)
    acc_ref[2] += jnp.sum(w_pix, axis=0)
    acc_ref[3] += jnp.sum(m_oor, axis=0)
    acc_ref[4] += jnp.sum(mk, axis=0)


def _choose_rows(B, M, rb, max_rows, vmem_budget):
    """Rows of 128 lanes processed per grid step."""
    # Double-buffered f32 upper bound for the five pipelined inputs, per row.
    bytes_per_row = (2 * B * M + 3 * B) * 128 * 4 * 2
    s = max(8, min(max_rows, vmem_budget // bytes_per_row))
    s = (int(s) // 8) * 8
    if rb <= s:
        return rb            # full row dim in one step (full-dim block allowed)
    return s


@functools.partial(jax.jit, static_argnames=("nsplit", "max_rows", "vmem_budget"))
def improved_multi_uncertainty_l1_loss(mean, logvar, target, mask, *,
                                       nsplit=2, max_rows=256,
                                       vmem_budget=8 * 1024 * 1024):
    """mean/logvar/mask: [B, H, W]; target: [B, M, C>=5, H, W]."""
    B, M, C, H, W = target.shape
    HW = H * W
    RB = pl.cdiv(HW, 128)          # row-blocks of 128 lanes
    pad = RB * 128 - HW

    # Free reshapes (views) when HW % 128 == 0; padding only in the ragged case.
    tgt = target.reshape(B, M, C, HW)
    mean2 = mean.reshape(B, HW)
    lv2 = logvar.reshape(B, HW)
    mk2 = mask.reshape(B, HW)
    if pad:
        tgt = jnp.pad(tgt, ((0, 0), (0, 0), (0, 0), (0, pad)))
        mean2 = jnp.pad(mean2, ((0, 0), (0, pad)))
        lv2 = jnp.pad(lv2, ((0, 0), (0, pad)))
        mk2 = jnp.pad(mk2, ((0, 0), (0, pad)))
    tgt = tgt.reshape(B, M, C, RB, 128)
    mean2 = mean2.reshape(B, RB, 128)
    lv2 = lv2.reshape(B, RB, 128)
    mk2 = mk2.reshape(B, RB, 128)

    S = _choose_rows(B, M, RB, max_rows, vmem_budget)
    nrb = pl.cdiv(RB, S)             # number of row-block tiles
    nsp = max(1, min(nsplit, nrb))   # leading "parallel" axis (2 TCs on v7x)
    T = pl.cdiv(nrb, nsp)
    needs_valid = (nsp * T * S * 128 != HW)

    def ridx(c, t):
        # Clamp so the DMA never targets a fully out-of-range tile; the
        # in-kernel validity mask zeroes duplicated / padded rows.
        return jnp.minimum(c * T + t, nrb - 1)

    kernel = functools.partial(_loss_partials_kernel, hw=HW, rows=S,
                               needs_valid=needs_valid)

    acc = pl.pallas_call(
        kernel,
        out_shape=jax.ShapeDtypeStruct((nsp, 5, S, 128), jnp.float32),
        grid_spec=pltpu.PrefetchScalarGridSpec(
            num_scalar_prefetch=0,
            grid=(nsp, T),
            in_specs=[
                # channel-3 (weights) and channel-4 (targets) views of target:
                # channel select done by the BlockSpec, no HBM slice copies.
                pl.BlockSpec((B, M, None, S, 128),
                             lambda c, t: (0, 0, 3, ridx(c, t), 0)),
                pl.BlockSpec((B, M, None, S, 128),
                             lambda c, t: (0, 0, 4, ridx(c, t), 0)),
                pl.BlockSpec((B, S, 128), lambda c, t: (0, ridx(c, t), 0)),
                pl.BlockSpec((B, S, 128), lambda c, t: (0, ridx(c, t), 0)),
                pl.BlockSpec((B, S, 128), lambda c, t: (0, ridx(c, t), 0)),
            ],
            out_specs=pl.BlockSpec((None, 5, S, 128),
                                   lambda c, t: (c, 0, 0, 0)),
        ),
        compiler_params=pltpu.CompilerParams(
            dimension_semantics=("parallel", "arbitrary")),
    )(tgt, tgt, mean2, lv2, mk2)

    # Final tiny cross-lane reduction + scalar combine in plain JAX.
    sums = acc.sum(axis=(0, 2, 3))                 # (5,)
    a, boor, ws, coor, cnt = sums[0], sums[1], sums[2], sums[3], sums[4]

    n_total = jnp.float32(B * HW)                  # mask_oor.flatten().shape[0]
    w_mean = ws / n_total                          # mean(sum(weights, 1))
    # coor == 0 -> inf/NaN, mirroring PyTorch's division-by-zero behaviour.
    total = (a / w_mean + (n_total / coor) * boor) * 0.5
    # count == 0 => PyTorch returns (loss * 0).sum() == 0 for finite losses.
    # TODO(synk): count uses the float-mask sum (PyTorch: mask.int().sum());
    # identical for {0,1}-valued masks.
    return jnp.where(cnt == 0, jnp.float32(0.0), total / cnt)


def _reference(mean, logvar, target, mask):
    """Pure-JAX transcription of the PyTorch forward (for verification)."""
    weights = target[:, :, 3]
    targets = target[:, :, 4]
    loss = jnp.exp(-logvar)[:, None] * jnp.abs(mean[:, None] - targets)
    loss = loss + logvar[:, None]
    loss = loss * weights
    loss = jnp.sum(loss, axis=1) / jnp.mean(jnp.sum(weights, axis=1))
    loss_oor = -logvar
    mask_oor = (jnp.sum(weights, axis=1) < 0.01).astype(jnp.float32)
    loss_oor = loss_oor * mask_oor
    loss_oor = loss_oor * (mask_oor.size / jnp.sum(mask_oor))
    loss = (loss + loss_oor) / 2.0
    count = jnp.sum(mask.astype(jnp.int32))
    loss = loss * mask.astype(jnp.float32)
    return jnp.where(count == 0, jnp.sum(loss), jnp.sum(loss) / count)


def _make_inputs(key, B, M, C, H, W):
    k1, k2, k3, k4, k5, k6 = jax.random.split(key, 6)
    mean = jax.random.normal(k1, (B, H, W), dtype=jnp.float32)
    logvar = 0.3 * jax.random.normal(k2, (B, H, W), dtype=jnp.float32)
    target = jax.random.normal(k3, (B, M, C, H, W), dtype=jnp.float32)
    # Weights in [0.2, 1.0], with a zeroed patch so mask_oor has nonzero count.
    wts = 0.2 + 0.8 * jax.random.uniform(k4, (B, M, H, W), dtype=jnp.float32)
    oor_patch = jnp.ones((B, 1, H, W), jnp.float32).at[:, :, :4, :4].set(0.0)
    wts = wts * oor_patch
    tgts = jax.random.normal(k5, (B, M, H, W), dtype=jnp.float32)
    target = target.at[:, :, 3].set(wts).at[:, :, 4].set(tgts)
    # Binary mask (~70% valid).  TODO(synk): mask_padding is unused in the
    # original forward, so it is omitted here.
    mask = (jax.random.uniform(k6, (B, H, W)) < 0.7).astype(jnp.float32)
    return mean, logvar, target, mask


if __name__ == "__main__":
    key = jax.random.PRNGKey(0)
    # Small cases: (1) aligned fast path, (2) H*W not a multiple of 128
    # (lane padding + validity mask), (3) multi-tile + 2-way parallel split
    # with partial/clamped tiles (max_rows forced small to exercise it).
    cases = [
        (2, 3, 5, 16, 16, {}),
        (2, 2, 5, 24, 24, {}),
        (2, 3, 5, 48, 48, dict(max_rows=8)),
    ]
    for B, M, C, H, W, kw in cases:
        key, sub = jax.random.split(key)
        mean, logvar, target, mask = _make_inputs(sub, B, M, C, H, W)
        out = jax.block_until_ready(
            improved_multi_uncertainty_l1_loss(mean, logvar, target, mask, **kw))
        ref = jax.block_until_ready(_reference(mean, logvar, target, mask))
        np.testing.assert_allclose(np.asarray(out), np.asarray(ref),
                                   rtol=3e-4, atol=1e-5)
    print("KERNEL_OK")
</pallas_src>

<mosaic_0001>
module attributes {stable_mosaic.version = 11 : i64} {
  func.func @_loss_partials_kernel(%arg0: i32, %arg1: i32, %arg2: memref<2x3x1x2x128xf32, #tpu.memory_space<vmem>>, %arg3: memref<2x3x1x2x128xf32, #tpu.memory_space<vmem>>, %arg4: memref<2x2x128xf32, #tpu.memory_space<vmem>>, %arg5: memref<2x2x128xf32, #tpu.memory_space<vmem>>, %arg6: memref<2x2x128xf32, #tpu.memory_space<vmem>>, %arg7: memref<1x5x2x128xf32, #tpu.memory_space<vmem>>) attributes {dimension_semantics = [#tpu.dimension_semantics<parallel>, #tpu.dimension_semantics<arbitrary>], iteration_bounds = array<i64: 1, 1>, scalar_prefetch = 0 : i64, scratch_operands = 0 : i64, tpu.core_type = #tpu.core_type<tc>, window_params = [{transform_indices = @transform_0, window_bounds = array<i64: 2, 3, 1, 2, 128>}, {transform_indices = @transform_1, window_bounds = array<i64: 2, 3, 1, 2, 128>}, {transform_indices = @transform_2, window_bounds = array<i64: 2, 2, 128>}, {transform_indices = @transform_3, window_bounds = array<i64: 2, 2, 128>}, {transform_indices = @transform_4, window_bounds = array<i64: 2, 2, 128>}, {transform_indices = @transform_5, window_bounds = array<i64: 1, 5, 2, 128>}]} {
    %c0_i32 = arith.constant 0 : i32
    %0 = arith.cmpi eq, %arg1, %c0_i32 : i32
    %1 = arith.extui %0 : i1 to i32
    %c0_i32_0 = arith.constant 0 : i32
    %2 = arith.cmpi ne, %1, %c0_i32_0 : i32
    scf.if %2 {
      %cst_64 = arith.constant 0.000000e+00 : f32
      %70 = vector.broadcast %cst_64 : f32 to vector<5x2x128xf32>
      %c0_65 = arith.constant 0 : index
      %c0_66 = arith.constant 0 : index
      %c0_67 = arith.constant 0 : index
      %c0_68 = arith.constant 0 : index
      %71 = vector.load %arg7[%c0_65, %c0_66, %c0_67, %c0_68] : memref<1x5x2x128xf32, #tpu.memory_space<vmem>>, vector<1x5x2x128xf32>
      %72 = vector.shape_cast %71 : vector<1x5x2x128xf32> to vector<5x2x128xf32>
      %73 = vector.shape_cast %70 : vector<5x2x128xf32> to vector<1x5x2x128xf32>
      tpu.vector_store %arg7[%c0_65, %c0_66, %c0_67, %c0_68], %73 {strides = array<i32>} : memref<1x5x2x128xf32, #tpu.memory_space<vmem>>, vector<1x5x2x128xf32>,
    } else {
    }
    %c0 = arith.constant 0 : index
    %c0_1 = arith.constant 0 : index
    %c0_2 = arith.constant 0 : index
    %c0_3 = arith.constant 0 : index
    %c0_4 = arith.constant 0 : index
    %3 = vector.load %arg2[%c0, %c0_1, %c0_2, %c0_3, %c0_4] : memref<2x3x1x2x128xf32, #tpu.memory_space<vmem>>, vector<2x3x1x2x128xf32>
    %4 = vector.shape_cast %3 : vector<2x3x1x2x128xf32> to vector<2x3x2x128xf32>
    %c0_5 = arith.constant 0 : index
    %c0_6 = arith.constant 0 : index
    %c0_7 = arith.constant 0 : index
    %c0_8 = arith.constant 0 : index
    %c0_9 = arith.constant 0 : index
    %5 = vector.load %arg3[%c0_5, %c0_6, %c0_7, %c0_8, %c0_9] : memref<2x3x1x2x128xf32, #tpu.memory_space<vmem>>, vector<2x3x1x2x128xf32>
    %6 = vector.shape_cast %5 : vector<2x3x1x2x128xf32> to vector<2x3x2x128xf32>
    %c0_10 = arith.constant 0 : index
    %c0_11 = arith.constant 0 : index
    %c0_12 = arith.constant 0 : index
    %7 = vector.load %arg4[%c0_10, %c0_11, %c0_12] : memref<2x2x128xf32, #tpu.memory_space<vmem>>, vector<2x2x128xf32>
    %c0_13 = arith.constant 0 : index
    %c0_14 = arith.constant 0 : index
    %c0_15 = arith.constant 0 : index
    %8 = vector.load %arg5[%c0_13, %c0_14, %c0_15] : memref<2x2x128xf32, #tpu.memory_space<vmem>>, vector<2x2x128xf32>
    %c0_16 = arith.constant 0 : index
    %c0_17 = arith.constant 0 : index
    %c0_18 = arith.constant 0 : index
    %9 = vector.load %arg6[%c0_16, %c0_17, %c0_18] : memref<2x2x128xf32, #tpu.memory_space<vmem>>, vector<2x2x128xf32>
    %cst = arith.constant 0.000000e+00 : f32
    %10 = vector.broadcast %cst : f32 to vector<2x2x128xf32>
    %11 = arith.subf %10, %8 : vector<2x2x128xf32>
    %12 = math.exp %11 : vector<2x2x128xf32>
    %13 = vector.shape_cast %12 : vector<2x2x128xf32> to vector<2x1x2x128xf32>
    %14 = vector.shape_cast %7 : vector<2x2x128xf32> to vector<2x1x2x128xf32>
    %15 = vector.broadcast %14 : vector<2x1x2x128xf32> to vector<2x3x2x128xf32>
    %16 = arith.subf %15, %6 : vector<2x3x2x128xf32>
    %17 = math.absf %16 : vector<2x3x2x128xf32>
    %18 = vector.broadcast %13 : vector<2x1x2x128xf32> to vector<2x3x2x128xf32>
    %19 = arith.mulf %18, %17 : vector<2x3x2x128xf32>
    %20 = vector.shape_cast %8 : vector<2x2x128xf32> to vector<2x1x2x128xf32>
    %21 = vector.broadcast %20 : vector<2x1x2x128xf32> to vector<2x3x2x128xf32>
    %22 = arith.addf %19, %21 : vector<2x3x2x128xf32>
    %23 = arith.mulf %22, %4 : vector<2x3x2x128xf32>
    %cst_19 = arith.constant dense<0.000000e+00> : vector<2x2x128xf32>
    %24 = vector.multi_reduction <add>, %23, %cst_19 [1] : vector<2x3x2x128xf32> to vector<2x2x128xf32>
    %cst_20 = arith.constant dense<0.000000e+00> : vector<2x2x128xf32>
    %25 = vector.multi_reduction <add>, %4, %cst_20 [1] : vector<2x3x2x128xf32> to vector<2x2x128xf32>
    %cst_21 = arith.constant 0.00999999977 : f32
    %26 = vector.broadcast %cst_21 : f32 to vector<2x2x128xf32>
    %27 = arith.cmpf olt, %25, %26 : vector<2x2x128xf32>
    %28 = arith.extui %27 : vector<2x2x128xi1> to vector<2x2x128xi32>
    %29 = arith.sitofp %28 : vector<2x2x128xi32> to vector<2x2x128xf32>
    %c0_22 = arith.constant 0 : index
    %c0_23 = arith.constant 0 : index
    %c0_24 = arith.constant 0 : index
    %c0_25 = arith.constant 0 : index
    %30 = vector.load %arg7[%c0_22, %c0_23, %c0_24, %c0_25] : memref<1x5x2x128xf32, #tpu.memory_space<vmem>>, vector<1x1x2x128xf32>
    %31 = vector.shape_cast %30 : vector<1x1x2x128xf32> to vector<2x128xf32>
    %32 = arith.mulf %24, %9 : vector<2x2x128xf32>
    %cst_26 = arith.constant dense<0.000000e+00> : vector<2x128xf32>
    %33 = vector.multi_reduction <add>, %32, %cst_26 [0] : vector<2x2x128xf32> to vector<2x128xf32>
    %34 = arith.addf %31, %33 : vector<2x128xf32>
    %c0_27 = arith.constant 0 : index
    %c0_28 = arith.constant 0 : index
    %c0_29 = arith.constant 0 : index
    %c0_30 = arith.constant 0 : index
    %35 = vector.load %arg7[%c0_27, %c0_28, %c0_29, %c0_30] : memref<1x5x2x128xf32, #tpu.memory_space<vmem>>, vector<1x1x2x128xf32>
    %36 = vector.shape_cast %35 : vector<1x1x2x128xf32> to vector<2x128xf32>
    %37 = vector.shape_cast %34 : vector<2x128xf32> to vector<1x1x2x128xf32>
    tpu.vector_store %arg7[%c0_27, %c0_28, %c0_29, %c0_30], %37 {strides = array<i32>} : memref<1x5x2x128xf32, #tpu.memory_space<vmem>>, vector<1x1x2x128xf32>,
    %c0_31 = arith.constant 0 : index
    %c1 = arith.constant 1 : index
    %c0_32 = arith.constant 0 : index
    %c0_33 = arith.constant 0 : index
    %38 = vector.load %arg7[%c0_31, %c1, %c0_32, %c0_33] : memref<1x5x2x128xf32, #tpu.memory_space<vmem>>, vector<1x1x2x128xf32>
    %39 = vector.shape_cast %38 : vector<1x1x2x128xf32> to vector<2x128xf32>
    %cst_34 = arith.constant 0.000000e+00 : f32
    %40 = vector.broadcast %cst_34 : f32 to vector<2x2x128xf32>
    %41 = arith.subf %40, %8 : vector<2x2x128xf32>
    %42 = arith.mulf %41, %29 : vector<2x2x128xf32>
    %43 = arith.mulf %42, %9 : vector<2x2x128xf32>
    %cst_35 = arith.constant dense<0.000000e+00> : vector<2x128xf32>
    %44 = vector.multi_reduction <add>, %43, %cst_35 [0] : vector<2x2x128xf32> to vector<2x128xf32>
    %45 = arith.addf %39, %44 : vector<2x128xf32>
    %c0_36 = arith.constant 0 : index
    %c1_37 = arith.constant 1 : index
    %c0_38 = arith.constant 0 : index
    %c0_39 = arith.constant 0 : index
    %46 = vector.load %arg7[%c0_36, %c1_37, %c0_38, %c0_39] : memref<1x5x2x128xf32, #tpu.memory_space<vmem>>, vector<1x1x2x128xf32>
    %47 = vector.shape_cast %46 : vector<1x1x2x128xf32> to vector<2x128xf32>
    %48 = vector.shape_cast %45 : vector<2x128xf32> to vector<1x1x2x128xf32>
    tpu.vector_store %arg7[%c0_36, %c1_37, %c0_38, %c0_39], %48 {strides = array<i32>} : memref<1x5x2x128xf32, #tpu.memory_space<vmem>>, vector<1x1x2x128xf32>,
    %c0_40 = arith.constant 0 : index
    %c2 = arith.constant 2 : index
    %c0_41 = arith.constant 0 : index
    %c0_42 = arith.constant 0 : index
    %49 = vector.load %arg7[%c0_40, %c2, %c0_41, %c0_42] : memref<1x5x2x128xf32, #tpu.memory_space<vmem>>, vector<1x1x2x128xf32>
    %50 = vector.shape_cast %49 : vector<1x1x2x128xf32> to vector<2x128xf32>
    %cst_43 = arith.constant dense<0.000000e+00> : vector<2x128xf32>
    %51 = vector.multi_reduction <add>, %25, %cst_43 [0] : vector<2x2x128xf32> to vector<2x128xf32>
    %52 = arith.addf %50, %51 : vector<2x128xf32>
    %c0_44 = arith.constant 0 : index
    %c2_45 = arith.constant 2 : index
    %c0_46 = arith.constant 0 : index
    %c0_47 = arith.constant 0 : index
    %53 = vector.load %arg7[%c0_44, %c2_45, %c0_46, %c0_47] : memref<1x5x2x128xf32, #tpu.memory_space<vmem>>, vector<1x1x2x128xf32>
    %54 = vector.shape_cast %53 : vector<1x1x2x128xf32> to vector<2x128xf32>
    %55 = vector.shape_cast %52 : vector<2x128xf32> to vector<1x1x2x128xf32>
    tpu.vector_store %arg7[%c0_44, %c2_45, %c0_46, %c0_47], %55 {strides = array<i32>} : memref<1x5x2x128xf32, #tpu.memory_space<vmem>>, vector<1x1x2x128xf32>,
    %c0_48 = arith.constant 0 : index
    %c3 = arith.constant 3 : index
    %c0_49 = arith.constant 0 : index
    %c0_50 = arith.constant 0 : index
    %56 = vector.load %arg7[%c0_48, %c3, %c0_49, %c0_50] : memref<1x5x2x128xf32, #tpu.memory_space<vmem>>, vector<1x1x2x128xf32>
    %57 = vector.shape_cast %56 : vector<1x1x2x128xf32> to vector<2x128xf32>
    %cst_51 = arith.constant dense<0.000000e+00> : vector<2x128xf32>
    %58 = vector.multi_reduction <add>, %29, %cst_51 [0] : vector<2x2x128xf32> to vector<2x128xf32>
    %59 = arith.addf %57, %58 : vector<2x128xf32>
    %c0_52 = arith.constant 0 : index
    %c3_53 = arith.constant 3 : index
    %c0_54 = arith.constant 0 : index
    %c0_55 = arith.constant 0 : index
    %60 = vector.load %arg7[%c0_52, %c3_53, %c0_54, %c0_55] : memref<1x5x2x128xf32, #tpu.memory_space<vmem>>, vector<1x1x2x128xf32>
    %61 = vector.shape_cast %60 : vector<1x1x2x128xf32> to vector<2x128xf32>
    %62 = vector.shape_cast %59 : vector<2x128xf32> to vector<1x1x2x128xf32>
    tpu.vector_store %arg7[%c0_52, %c3_53, %c0_54, %c0_55], %62 {strides = array<i32>} : memref<1x5x2x128xf32, #tpu.memory_space<vmem>>, vector<1x1x2x128xf32>,
    %c0_56 = arith.constant 0 : index
    %c4 = arith.constant 4 : index
    %c0_57 = arith.constant 0 : index
    %c0_58 = arith.constant 0 : index
    %63 = vector.load %arg7[%c0_56, %c4, %c0_57, %c0_58] : memref<1x5x2x128xf32, #tpu.memory_space<vmem>>, vector<1x1x2x128xf32>
    %64 = vector.shape_cast %63 : vector<1x1x2x128xf32> to vector<2x128xf32>
    %cst_59 = arith.constant dense<0.000000e+00> : vector<2x128xf32>
    %65 = vector.multi_reduction <add>, %9, %cst_59 [0] : vector<2x2x128xf32> to vector<2x128xf32>
    %66 = arith.addf %64, %65 : vector<2x128xf32>
    %c0_60 = arith.constant 0 : index
    %c4_61 = arith.constant 4 : index
    %c0_62 = arith.constant 0 : index
    %c0_63 = arith.constant 0 : index
    %67 = vector.load %arg7[%c0_60, %c4_61, %c0_62, %c0_63] : memref<1x5x2x128xf32, #tpu.memory_space<vmem>>, vector<1x1x2x128xf32>
    %68 = vector.shape_cast %67 : vector<1x1x2x128xf32> to vector<2x128xf32>
    %69 = vector.shape_cast %66 : vector<2x128xf32> to vector<1x1x2x128xf32>
    tpu.vector_store %arg7[%c0_60, %c4_61, %c0_62, %c0_63], %69 {strides = array<i32>} : memref<1x5x2x128xf32, #tpu.memory_space<vmem>>, vector<1x1x2x128xf32>,
    return
  }
  func.func @transform_0(%arg0: i32, %arg1: i32) -> (i32, i32, i32, i32, i32) {
    %c1_i32 = arith.constant 1 : i32
    %0 = arith.muli %arg0, %c1_i32 : i32
    %1 = arith.addi %0, %arg1 : i32
    %c0_i32 = arith.constant 0 : i32
    %2 = arith.minsi %1, %c0_i32 : i32
    %c0_i32_0 = arith.constant 0 : i32
    %c0_i32_1 = arith.constant 0 : i32
    %c3_i32 = arith.constant 3 : i32
    %c0_i32_2 = arith.constant 0 : i32
    %c0_i32_3 = arith.constant 0 : i32
    return %c0_i32_0, %c0_i32_1, %c3_i32, %2, %c0_i32_2 : i32, i32, i32, i32, i32
  }
  func.func @transform_1(%arg0: i32, %arg1: i32) -> (i32, i32, i32, i32, i32) {
    %c1_i32 = arith.constant 1 : i32
    %0 = arith.muli %arg0, %c1_i32 : i32
    %1 = arith.addi %0, %arg1 : i32
    %c0_i32 = arith.constant 0 : i32
    %2 = arith.minsi %1, %c0_i32 : i32
    %c0_i32_0 = arith.constant 0 : i32
    %c0_i32_1 = arith.constant 0 : i32
    %c4_i32 = arith.constant 4 : i32
    %c0_i32_2 = arith.constant 0 : i32
    %c0_i32_3 = arith.constant 0 : i32
    return %c0_i32_0, %c0_i32_1, %c4_i32, %2, %c0_i32_2 : i32, i32, i32, i32, i32
  }
  func.func @transform_2(%arg0: i32, %arg1: i32) -> (i32, i32, i32) {
    %c1_i32 = arith.constant 1 : i32
    %0 = arith.muli %arg0, %c1_i32 : i32
    %1 = arith.addi %0, %arg1 : i32
    %c0_i32 = arith.constant 0 : i32
    %2 = arith.minsi %1, %c0_i32 : i32
    %c0_i32_0 = arith.constant 0 : i32
    %c0_i32_1 = arith.constant 0 : i32
    %c0_i32_2 = arith.constant 0 : i32
    return %c0_i32_0, %2, %c0_i32_1 : i32, i32, i32
  }
  func.func @transform_3(%arg0: i32, %arg1: i32) -> (i32, i32, i32) {
    %c1_i32 = arith.constant 1 : i32
    %0 = arith.muli %arg0, %c1_i32 : i32
    %1 = arith.addi %0, %arg1 : i32
    %c0_i32 = arith.constant 0 : i32
    %2 = arith.minsi %1, %c0_i32 : i32
    %c0_i32_0 = arith.constant 0 : i32
    %c0_i32_1 = arith.constant 0 : i32
    %c0_i32_2 = arith.constant 0 : i32
    return %c0_i32_0, %2, %c0_i32_1 : i32, i32, i32
  }
  func.func @transform_4(%arg0: i32, %arg1: i32) -> (i32, i32, i32) {
    %c1_i32 = arith.constant 1 : i32
    %0 = arith.muli %arg0, %c1_i32 : i32
    %1 = arith.addi %0, %arg1 : i32
    %c0_i32 = arith.constant 0 : i32
    %2 = arith.minsi %1, %c0_i32 : i32
    %c0_i32_0 = arith.constant 0 : i32
    %c0_i32_1 = arith.constant 0 : i32
    %c0_i32_2 = arith.constant 0 : i32
    return %c0_i32_0, %2, %c0_i32_1 : i32, i32, i32
  }
  func.func @transform_5(%arg0: i32, %arg1: i32) -> (i32, i32, i32, i32) {
    %c0_i32 = arith.constant 0 : i32
    %c0_i32_0 = arith.constant 0 : i32
    %c0_i32_1 = arith.constant 0 : i32
    %c0_i32_2 = arith.constant 0 : i32
    return %arg0, %c0_i32, %c0_i32_0, %c0_i32_1 : i32, i32, i32, i32
  }
}

</mosaic_0001>

<llo_original>
// kernel: improved_multi_uncertainty_l1_loss.1
$region0: #{improved_multi_uncertainty_l1_loss.1}
  #allocation0 [shape = 'u32[]', space=smem, size = 0x4, offset = 0x4, fixed_abs, tag = 'smem constant byte address 0x4 - core index']
  #allocation1 [shape = 'u32[144,128]{1,0:T(1,128)}', space=vmem, size = 0x12000, scoped, tag = 'internal scratch']
  %s0 = inlined_call_operand.vmem [shape: f32[2,3,5,2,128], index: 0, kind: input, shape index: {}, may-alias: {0,1}]
  %s1 = inlined_call_operand.vmem [shape: f32[2,3,5,2,128], index: 1, kind: input, shape index: {}, may-alias: {0,1}]
  %s2 = inlined_call_operand.vmem [shape: f32[2,2,128], index: 2, kind: input, shape index: {}]
  %s3 = inlined_call_operand.vmem [shape: f32[2,2,128], index: 3, kind: input, shape index: {}]
  %s4 = inlined_call_operand.vmem [shape: f32[2,2,128], index: 4, kind: input, shape index: {}]
  %s5 = inlined_call_operand.vmem [shape: f32[1,5,2,128], index: 5, kind: output, shape index: {}]
  %s6 = sld [smem:[#allocation0]]
  $region116: #{improved_multi_uncertainty_l1_loss.1} parent=0
    _
  %s8 = ssub.s32 1, %s6
  %s9 = scalar_select 0, %s8, %s6
  $region1: #{improved_multi_uncertainty_l1_loss.1} parent=0
    #allocation2 [shape = 'u8[6144]{0}', space=vmem, size = 0x1800, scoped, tag = 'input window, operand 0, single buffered']
    #allocation3 [shape = 'u8[6144]{0}', space=vmem, size = 0x1800, scoped, tag = 'input window, operand 1, single buffered']
    // Predicated region
    $region2: #{improved_multi_uncertainty_l1_loss.1} parent=1 // pred_check
      _
    $region3: #{improved_multi_uncertainty_l1_loss.1} parent=1 // pred_check_branch
      %11 = sbr.rel (0) target = $region5
    $region4: #{improved_multi_uncertainty_l1_loss.1} parent=1 // pred_region
      %s12 = sadd.s32 0, 0
      %p13 = scmp.lt.s32.totalorder %s12, 0
      %s14 = scalar_select %p13, %s12, 0
      %s15 = sadd.s32 %s14, 3
      %s16 = smul.addr %s15, 2
      %s17 = scalar_lea.vmem %s0, %s16
      // Predicated region
      $region6: #{improved_multi_uncertainty_l1_loss.1} parent=4 // pred_check
        _
      $region7: #{improved_multi_uncertainty_l1_loss.1} parent=4 // pred_check_branch
        %19 = sbr.rel (0) target = $region9
      $region8: #{improved_multi_uncertainty_l1_loss.1} parent=4 // pred_region
        // Predicated region
        $region10: #{improved_multi_uncertainty_l1_loss.1} parent=8 // pred_check
          _
        $region11: #{improved_multi_uncertainty_l1_loss.1} parent=8 // pred_check_branch
          %21 = sbr.rel target = $region13
        $region12: #{improved_multi_uncertainty_l1_loss.1} parent=8 // pred_region
          // Predicated region
          $region25: #{improved_multi_uncertainty_l1_loss.1} parent=12 // pred_check
            _
          $region26: #{improved_multi_uncertainty_l1_loss.1} parent=12 // pred_check_branch
            %46 = sbr.rel (0) target = $region28
          $region27: #{improved_multi_uncertainty_l1_loss.1} parent=12 // pred_region
            loop: start=0, step=1, limit=1
            $region29: #{improved_multi_uncertainty_l1_loss.1} parent=27 // loop_pre_header
              _
            $region30: #{improved_multi_uncertainty_l1_loss.1} parent=27 // loop_header
              %s48 = sphi 0, %s52
              %p49 = scmp.ge.s32.totalorder %s48, 1
              %s53 = sphi %s17, %s17
              %s54 = sphi [#allocation2], [#allocation2]
            $region31: #{improved_multi_uncertainty_l1_loss.1} parent=27 // loop_header_branch
              %51 = sbr.rel (%p49) target = $region35
            $region32: #{improved_multi_uncertainty_l1_loss.1} parent=27 // loop_body
              _
            $region33: #{improved_multi_uncertainty_l1_loss.1} parent=27 // loop_footer
              %s52 = sadd.s32 1, %s48
            $region34: #{improved_multi_uncertainty_l1_loss.1} parent=27 // loop_footer_branch
              %47 = sbr.rel target = $region30
            $region35: #{improved_multi_uncertainty_l1_loss.1} parent=27 // loop_exit
              _
            loop: start=0, step=1, limit=1
            $region36: #{improved_multi_uncertainty_l1_loss.1} parent=27 // loop_pre_header
              _
            $region37: #{improved_multi_uncertainty_l1_loss.1} parent=27 // loop_header
              %s57 = sphi 0, %s61
              %p58 = scmp.ge.s32.totalorder %s57, 1
              %s62 = sphi %s17, %s17
              %s63 = sphi [#allocation2], [#allocation2]
            $region38: #{improved_multi_uncertainty_l1_loss.1} parent=27 // loop_header_branch
              %60 = sbr.rel (%p58) target = $region42
            $region39: #{improved_multi_uncertainty_l1_loss.1} parent=27 // loop_body
              %v64 = vld [vmem:[%s62] sm:$0x3]
              %65 = vst [vmem:[%s63] sm:$0x3] %v64
              %v66 = vld [vmem:[%s62 + $0xa] sm:$0x3]
              %67 = vst [vmem:[%s63 + $0x2] sm:$0x3] %v66
              %v68 = vld [vmem:[%s62 + $0x14] sm:$0x3]
              %69 = vst [vmem:[%s63 + $0x4] sm:$0x3] %v68
              %v70 = vld [vmem:[%s62 + $0x1e] sm:$0x3]
              %71 = vst [vmem:[%s63 + $0x6] sm:$0x3] %v70
              %v72 = vld [vmem:[%s62 + $0x28] sm:$0x3]
              %73 = vst [vmem:[%s63 + $0x8] sm:$0x3] %v72
              %v74 = vld [vmem:[%s62 + $0x32] sm:$0x3]
              %75 = vst [vmem:[%s63 + $0xa] sm:$0x3] %v74
            $region40: #{improved_multi_uncertainty_l1_loss.1} parent=27 // loop_footer
              %s61 = sadd.s32 1, %s57
            $region41: #{improved_multi_uncertainty_l1_loss.1} parent=27 // loop_footer_branch
              %56 = sbr.rel target = $region37
            $region42: #{improved_multi_uncertainty_l1_loss.1} parent=27 // loop_exit
              _
          $region28: #{improved_multi_uncertainty_l1_loss.1} parent=12 // pred_fallthru
            _
        $region13: #{improved_multi_uncertainty_l1_loss.1} parent=8 // pred_fallthru
          _
        // Predicated region
        $region14: #{improved_multi_uncertainty_l1_loss.1} parent=8 // pred_check
          _
        $region15: #{improved_multi_uncertainty_l1_loss.1} parent=8 // pred_check_branch
          %23 = sbr.rel (0) target = $region17
        $region16: #{improved_multi_uncertainty_l1_loss.1} parent=8 // pred_region
          loop: start=0, step=1, limit=1
          $region18: #{improved_multi_uncertainty_l1_loss.1} parent=16 // loop_pre_header
            _
          $region19: #{improved_multi_uncertainty_l1_loss.1} parent=16 // loop_header
            %s26 = sphi 0, %s30
            %p27 = scmp.ge.s32.totalorder %s26, 1
            %s31 = sphi %s17, %s17
            %s32 = sphi [#allocation2], [#allocation2]
          $region20: #{improved_multi_uncertainty_l1_loss.1} parent=16 // loop_header_branch
            %29 = sbr.rel (%p27) target = $region24
          $region21: #{improved_multi_uncertainty_l1_loss.1} parent=16 // loop_body
            %v33 = vld [vmem:[%s31] sm:$0x3]
            %34 = vst [vmem:[%s32] sm:$0x3] %v33
            %v35 = vld [vmem:[%s31 + $0xa] sm:$0x3]
            %36 = vst [vmem:[%s32 + $0x2] sm:$0x3] %v35
            %v37 = vld [vmem:[%s31 + $0x14] sm:$0x3]
            %38 = vst [vmem:[%s32 + $0x4] sm:$0x3] %v37
            %v39 = vld [vmem:[%s31 + $0x1e] sm:$0x3]
            %40 = vst [vmem:[%s32 + $0x6] sm:$0x3] %v39
            %v41 = vld [vmem:[%s31 + $0x28] sm:$0x3]
            %42 = vst [vmem:[%s32 + $0x8] sm:$0x3] %v41
            %v43 = vld [vmem:[%s31 + $0x32] sm:$0x3]
            %44 = vst [vmem:[%s32 + $0xa] sm:$0x3] %v43
          $region22: #{improved_multi_uncertainty_l1_loss.1} parent=16 // loop_footer
            %s30 = sadd.s32 1, %s26
          $region23: #{improved_multi_uncertainty_l1_loss.1} parent=16 // loop_footer_branch
            %25 = sbr.rel target = $region19
          $region24: #{improved_multi_uncertainty_l1_loss.1} parent=16 // loop_exit
            _
        $region17: #{improved_multi_uncertainty_l1_loss.1} parent=8 // pred_fallthru
          _
      $region9: #{improved_multi_uncertainty_l1_loss.1} parent=4 // pred_fallthru
        _
      %76 = vnop
    $region5: #{improved_multi_uncertainty_l1_loss.1} parent=1 // pred_fallthru
      _
    // Predicated region
    $region43: #{improved_multi_uncertainty_l1_loss.1} parent=1 // pred_check
      _
    $region44: #{improved_multi_uncertainty_l1_loss.1} parent=1 // pred_check_branch
      %78 = sbr.rel (0) target = $region46
    $region45: #{improved_multi_uncertainty_l1_loss.1} parent=1 // pred_region
      %s79 = sadd.s32 0, 0
      %p80 = scmp.lt.s32.totalorder %s79, 0
      %s81 = scalar_select %p80, %s79, 0
      %s82 = sadd.s32 %s81, 4
      %s83 = smul.addr %s82, 2
      %s84 = scalar_lea.vmem %s1, %s83
      // Predicated region
      $region47: #{improved_multi_uncertainty_l1_loss.1} parent=45 // pred_check
        _
      $region48: #{improved_multi_uncertainty_l1_loss.1} parent=45 // pred_check_branch
        %86 = sbr.rel (0) target = $region50
      $region49: #{improved_multi_uncertainty_l1_loss.1} parent=45 // pred_region
        // Predicated region
        $region51: #{improved_multi_uncertainty_l1_loss.1} parent=49 // pred_check
          _
        $region52: #{improved_multi_uncertainty_l1_loss.1} parent=49 // pred_check_branch
          %88 = sbr.rel target = $region54
        $region53: #{improved_multi_uncertainty_l1_loss.1} parent=49 // pred_region
          // Predicated region
          $region66: #{improved_multi_uncertainty_l1_loss.1} parent=53 // pred_check
            _
          $region67: #{improved_multi_uncertainty_l1_loss.1} parent=53 // pred_check_branch
            %113 = sbr.rel (0) target = $region69
          $region68: #{improved_multi_uncertainty_l1_loss.1} parent=53 // pred_region
            loop: start=0, step=1, limit=1
            $region70: #{improved_multi_uncertainty_l1_loss.1} parent=68 // loop_pre_header
              _
            $region71: #{improved_multi_uncertainty_l1_loss.1} parent=68 // loop_header
              %s115 = sphi 0, %s119
              %p116 = scmp.ge.s32.totalorder %s115, 1
              %s120 = sphi %s84, %s84
              %s121 = sphi [#allocation3], [#allocation3]
            $region72: #{improved_multi_uncertainty_l1_loss.1} parent=68 // loop_header_branch
              %118 = sbr.rel (%p116) target = $region76
            $region73: #{improved_multi_uncertainty_l1_loss.1} parent=68 // loop_body
              _
            $region74: #{improved_multi_uncertainty_l1_loss.1} parent=68 // loop_footer
              %s119 = sadd.s32 1, %s115
            $region75: #{improved_multi_uncertainty_l1_loss.1} parent=68 // loop_footer_branch
              %114 = sbr.rel target = $region71
            $region76: #{improved_multi_uncertainty_l1_loss.1} parent=68 // loop_exit
              _
            loop: start=0, step=1, limit=1
            $region77: #{improved_multi_uncertainty_l1_loss.1} parent=68 // loop_pre_header
              _
            $region78: #{improved_multi_uncertainty_l1_loss.1} parent=68 // loop_header
              %s124 = sphi 0, %s128
              %p125 = scmp.ge.s32.totalorder %s124, 1
              %s129 = sphi %s84, %s84
              %s130 = sphi [#allocation3], [#allocation3]
            $region79: #{improved_multi_uncertainty_l1_loss.1} parent=68 // loop_header_branch
              %127 = sbr.rel (%p125) target = $region83
            $region80: #{improved_multi_uncertainty_l1_loss.1} parent=68 // loop_body
              %v131 = vld [vmem:[%s129] sm:$0x3]
              %132 = vst [vmem:[%s130] sm:$0x3] %v131
              %v133 = vld [vmem:[%s129 + $0xa] sm:$0x3]
              %134 = vst [vmem:[%s130 + $0x2] sm:$0x3] %v133
              %v135 = vld [vmem:[%s129 + $0x14] sm:$0x3]
              %136 = vst [vmem:[%s130 + $0x4] sm:$0x3] %v135
              %v137 = vld [vmem:[%s129 + $0x1e] sm:$0x3]
              %138 = vst [vmem:[%s130 + $0x6] sm:$0x3] %v137
              %v139 = vld [vmem:[%s129 + $0x28] sm:$0x3]
              %140 = vst [vmem:[%s130 + $0x8] sm:$0x3] %v139
              %v141 = vld [vmem:[%s129 + $0x32] sm:$0x3]
              %142 = vst [vmem:[%s130 + $0xa] sm:$0x3] %v141
            $region81: #{improved_multi_uncertainty_l1_loss.1} parent=68 // loop_footer
              %s128 = sadd.s32 1, %s124
            $region82: #{improved_multi_uncertainty_l1_loss.1} parent=68 // loop_footer_branch
              %123 = sbr.rel target = $region78
            $region83: #{improved_multi_uncertainty_l1_loss.1} parent=68 // loop_exit
              _
          $region69: #{improved_multi_uncertainty_l1_loss.1} parent=53 // pred_fallthru
            _
        $region54: #{improved_multi_uncertainty_l1_loss.1} parent=49 // pred_fallthru
          _
        // Predicated region
        $region55: #{improved_multi_uncertainty_l1_loss.1} parent=49 // pred_check
          _
        $region56: #{improved_multi_uncertainty_l1_loss.1} parent=49 // pred_check_branch
          %90 = sbr.rel (0) target = $region58
        $region57: #{improved_multi_uncertainty_l1_loss.1} parent=49 // pred_region
          loop: start=0, step=1, limit=1
          $region59: #{improved_multi_uncertainty_l1_loss.1} parent=57 // loop_pre_header
            _
          $region60: #{improved_multi_uncertainty_l1_loss.1} parent=57 // loop_header
            %s93 = sphi 0, %s97
            %p94 = scmp.ge.s32.totalorder %s93, 1
            %s98 = sphi %s84, %s84
            %s99 = sphi [#allocation3], [#allocation3]
          $region61: #{improved_multi_uncertainty_l1_loss.1} parent=57 // loop_header_branch
            %96 = sbr.rel (%p94) target = $region65
          $region62: #{improved_multi_uncertainty_l1_loss.1} parent=57 // loop_body
            %v100 = vld [vmem:[%s98] sm:$0x3]
            %101 = vst [vmem:[%s99] sm:$0x3] %v100
            %v102 = vld [vmem:[%s98 + $0xa] sm:$0x3]
            %103 = vst [vmem:[%s99 + $0x2] sm:$0x3] %v102
            %v104 = vld [vmem:[%s98 + $0x14] sm:$0x3]
            %105 = vst [vmem:[%s99 + $0x4] sm:$0x3] %v104
            %v106 = vld [vmem:[%s98 + $0x1e] sm:$0x3]
            %107 = vst [vmem:[%s99 + $0x6] sm:$0x3] %v106
            %v108 = vld [vmem:[%s98 + $0x28] sm:$0x3]
            %109 = vst [vmem:[%s99 + $0x8] sm:$0x3] %v108
            %v110 = vld [vmem:[%s98 + $0x32] sm:$0x3]
            %111 = vst [vmem:[%s99 + $0xa] sm:$0x3] %v110
          $region63: #{improved_multi_uncertainty_l1_loss.1} parent=57 // loop_footer
            %s97 = sadd.s32 1, %s93
          $region64: #{improved_multi_uncertainty_l1_loss.1} parent=57 // loop_footer_branch
            %92 = sbr.rel target = $region60
          $region65: #{improved_multi_uncertainty_l1_loss.1} parent=57 // loop_exit
            _
        $region58: #{improved_multi_uncertainty_l1_loss.1} parent=49 // pred_fallthru
          _
      $region50: #{improved_multi_uncertainty_l1_loss.1} parent=45 // pred_fallthru
        _
      %143 = vnop
    $region46: #{improved_multi_uncertainty_l1_loss.1} parent=1 // pred_fallthru
      _
    // Predicated region
    $region84: #{improved_multi_uncertainty_l1_loss.1} parent=1 // pred_check
      _
    $region85: #{improved_multi_uncertainty_l1_loss.1} parent=1 // pred_check_branch
      %145 = sbr.rel (0) target = $region87
    $region86: #{improved_multi_uncertainty_l1_loss.1} parent=1 // pred_region
      %s146 = sadd.s32 0, 0
      %p147 = scmp.lt.s32.totalorder %s146, 0
      %s148 = scalar_select %p147, %s146, 0
      %p149 = scmp.lt.s32.totalorder %s148, 0
      %s150 = scalar_select %p149, %s148, 0
      %s151 = smul.addr %s150, 2
      %s152 = scalar_lea.vmem %s2, %s151
      %s153 = sadd.s32 0, 0
      %p154 = scmp.lt.s32.totalorder %s153, 0
      %s155 = scalar_select %p154, %s153, 0
    $region87: #{improved_multi_uncertainty_l1_loss.1} parent=1 // pred_fallthru
      _
    // Predicated region
    $region88: #{improved_multi_uncertainty_l1_loss.1} parent=1 // pred_check
      _
    $region89: #{improved_multi_uncertainty_l1_loss.1} parent=1 // pred_check_branch
      %157 = sbr.rel (0) target = $region91
    $region90: #{improved_multi_uncertainty_l1_loss.1} parent=1 // pred_region
      %s158 = sadd.s32 0, 0
      %p159 = scmp.lt.s32.totalorder %s158, 0
      %s160 = scalar_select %p159, %s158, 0
      %p161 = scmp.lt.s32.totalorder %s160, 0
      %s162 = scalar_select %p161, %s160, 0
      %s163 = smul.addr %s162, 2
      %s164 = scalar_lea.vmem %s3, %s163
      %s165 = sadd.s32 0, 0
      %p166 = scmp.lt.s32.totalorder %s165, 0
      %s167 = scalar_select %p166, %s165, 0
    $region91: #{improved_multi_uncertainty_l1_loss.1} parent=1 // pred_fallthru
      _
    // Predicated region
    $region92: #{improved_multi_uncertainty_l1_loss.1} parent=1 // pred_check
      _
    $region93: #{improved_multi_uncertainty_l1_loss.1} parent=1 // pred_check_branch
      %169 = sbr.rel (0) target = $region95
    $region94: #{improved_multi_uncertainty_l1_loss.1} parent=1 // pred_region
      %s170 = sadd.s32 0, 0
      %p171 = scmp.lt.s32.totalorder %s170, 0
      %s172 = scalar_select %p171, %s170, 0
      %p173 = scmp.lt.s32.totalorder %s172, 0
      %s174 = scalar_select %p173, %s172, 0
      %s175 = smul.addr %s174, 2
      %s176 = scalar_lea.vmem %s4, %s175
      %s177 = sadd.s32 0, 0
      %p178 = scmp.lt.s32.totalorder %s177, 0
      %s179 = scalar_select %p178, %s177, 0
    $region95: #{improved_multi_uncertainty_l1_loss.1} parent=1 // pred_fallthru
      _
    // Predicated region
    $region96: #{improved_multi_uncertainty_l1_loss.1} parent=1 // pred_check
      _
    $region97: #{improved_multi_uncertainty_l1_loss.1} parent=1 // pred_check_branch
      %181 = sbr.rel (0) target = $region99
    $region98: #{improved_multi_uncertainty_l1_loss.1} parent=1 // pred_region
      _
    $region99: #{improved_multi_uncertainty_l1_loss.1} parent=1 // pred_fallthru
      _
    // Predicated region
    $region100: #{improved_multi_uncertainty_l1_loss.1} parent=1 // pred_check
      _
    $region101: #{improved_multi_uncertainty_l1_loss.1} parent=1 // pred_check_branch
      %183 = sbr.rel (0) target = $region103
    $region102: #{improved_multi_uncertainty_l1_loss.1} parent=1 // pred_region
      _
    $region103: #{improved_multi_uncertainty_l1_loss.1} parent=1 // pred_fallthru
      _
    %s184 = sadd.s32 0, 0
    %p185 = scmp.lt.s32.totalorder %s184, 0
    %s186 = scalar_select %p185, %s184, 0
    %p187 = scmp.lt.s32.totalorder %s186, 0
    %s188 = scalar_select %p187, %s186, 0
    %s189 = smul.addr %s188, 2
    %s190 = scalar_lea.vmem %s2, %s189
    %s191 = sadd.s32 0, 0
    %p192 = scmp.lt.s32.totalorder %s191, 0
    %s193 = scalar_select %p192, %s191, 0
    %p194 = scmp.lt.s32.totalorder %s193, 0
    %s195 = scalar_select %p194, %s193, 0
    %s196 = smul.addr %s195, 2
    %s197 = scalar_lea.vmem %s3, %s196
    %s198 = sadd.s32 0, 0
    %p199 = scmp.lt.s32.totalorder %s198, 0
    %s200 = scalar_select %p199, %s198, 0
    %p201 = scmp.lt.s32.totalorder %s200, 0
    %s202 = scalar_select %p201, %s200, 0
    %s203 = smul.addr %s202, 2
    %s204 = scalar_lea.vmem %s4, %s203
    %s205 = sadd.s32 0, 0
    %p206 = scmp.lt.s32.totalorder %s205, 0
    %s207 = scalar_select %p206, %s205, 0
    %s208 = sadd.s32 0, 0
    %p209 = scmp.lt.s32.totalorder %s208, 0
    %s210 = scalar_select %p209, %s208, 0
    %s211 = sadd.s32 0, 0
    %p212 = scmp.lt.s32.totalorder %s211, 0
    %s213 = scalar_select %p212, %s211, 0
    %p214 = scmp.lt.s32.totalorder %s213, 0
    %s215 = scalar_select %p214, %s213, 0
    %s216 = smul.addr %s215, 2
    %s217 = scalar_lea.vmem %s2, %s216
    %s218 = sadd.s32 0, 0
    %p219 = scmp.lt.s32.totalorder %s218, 0
    %s220 = scalar_select %p219, %s218, 0
    %s221 = sadd.s32 0, 0
    %p222 = scmp.lt.s32.totalorder %s221, 0
    %s223 = scalar_select %p222, %s221, 0
    %p224 = scmp.lt.s32.totalorder %s223, 0
    %s225 = scalar_select %p224, %s223, 0
    %s226 = smul.addr %s225, 2
    %s227 = scalar_lea.vmem %s3, %s226
    %s228 = sadd.s32 0, 0
    %p229 = scmp.lt.s32.totalorder %s228, 0
    %s230 = scalar_select %p229, %s228, 0
    %s231 = sadd.s32 0, 0
    %p232 = scmp.lt.s32.totalorder %s231, 0
    %s233 = scalar_select %p232, %s231, 0
    %p234 = scmp.lt.s32.totalorder %s233, 0
    %s235 = scalar_select %p234, %s233, 0
    %s236 = smul.addr %s235, 2
    %s237 = scalar_lea.vmem %s4, %s236
    %s238 = sadd.s32 0, 0
    %p239 = scmp.lt.s32.totalorder %s238, 0
    %s240 = scalar_select %p239, %s238, 0
    %p241 = scmp.eq.s32.totalorder 0, 0
    // Predicated region
    $region104: #{improved_multi_uncertainty_l1_loss.1} parent=1 // pred_check
      %p242 = pneg %p241
    $region105: #{improved_multi_uncertainty_l1_loss.1} parent=1 // pred_check_branch
      %244 = sbr.rel (%p242) target = $region107
    $region106: #{improved_multi_uncertainty_l1_loss.1} parent=1 // pred_region
      %245 = vst [vmem:[%s5] sm:$0x3] 0.0
      %246 = vst [vmem:[%s5 + $0x2] sm:$0x3] 0.0
      %247 = vst [vmem:[%s5 + $0x4] sm:$0x3] 0.0
      %248 = vst [vmem:[%s5 + $0x6] sm:$0x3] 0.0
      %249 = vst [vmem:[%s5 + $0x8] sm:$0x3] 0.0
    $region107: #{improved_multi_uncertainty_l1_loss.1} parent=1 // pred_fallthru
      _
    %v250 = vld [vmem:[#allocation2] sm:$0x3]
    %v251 = vld [vmem:[#allocation2 + $0x2] sm:$0x3]
    %v252 = vld [vmem:[#allocation2 + $0x4] sm:$0x3]
    %v253 = vld [vmem:[#allocation2 + $0x6] sm:$0x3]
    %v254 = vld [vmem:[#allocation2 + $0x8] sm:$0x3]
    %v255 = vld [vmem:[#allocation2 + $0xa] sm:$0x3]
    %v256 = vld [vmem:[#allocation3] sm:$0x3]
    %v257 = vld [vmem:[#allocation3 + $0x2] sm:$0x3]
    %v258 = vld [vmem:[#allocation3 + $0x4] sm:$0x3]
    %v259 = vld [vmem:[#allocation3 + $0x6] sm:$0x3]
    %v260 = vld [vmem:[#allocation3 + $0x8] sm:$0x3]
    %v261 = vld [vmem:[#allocation3 + $0xa] sm:$0x3]
    %v262 = vld [vmem:[%s217] sm:$0x3]
    %v263 = vld [vmem:[%s217 + $0x2] sm:$0x3]
    %v264 = vld [vmem:[%s227] sm:$0x3]
    %v265 = vld [vmem:[%s227 + $0x2] sm:$0x3]
    %v266 = vld [vmem:[%s237] sm:$0x3]
    %v267 = vld [vmem:[%s237 + $0x2] sm:$0x3]
    %v268 = vsub.f32 0.0, %v264
    %v269 = vsub.f32 0.0, %v265
    %v270 = vmul.f32 %v268, 1.442695
    %v271 = vpow.pop %v270
    %v272 = vmul.f32 %v269, 1.442695
    %v273 = vpow.pop %v272
    %v274 = vsub.f32 %v262, %v256
    %v275 = vsub.f32 %v262, %v257
    %v276 = vsub.f32 %v262, %v258
    %v277 = vsub.f32 %v263, %v259
    %v278 = vsub.f32 %v263, %v260
    %v279 = vsub.f32 %v263, %v261
    %v280 = vand.u32 2147483647, %v274
    %v281 = vand.u32 2147483647, %v275
    %v282 = vand.u32 2147483647, %v276
    %v283 = vand.u32 2147483647, %v277
    %v284 = vand.u32 2147483647, %v278
    %v285 = vand.u32 2147483647, %v279
    %v286 = vmul.f32 %v271, %v280
    %v287 = vmul.f32 %v271, %v281
    %v288 = vmul.f32 %v271, %v282
    %v289 = vmul.f32 %v273, %v283
    %v290 = vmul.f32 %v273, %v284
    %v291 = vmul.f32 %v273, %v285
    %v292 = vadd.f32 %v286, %v264
    %v293 = vadd.f32 %v287, %v264
    %v294 = vadd.f32 %v288, %v264
    %v295 = vadd.f32 %v289, %v265
    %v296 = vadd.f32 %v290, %v265
    %v297 = vadd.f32 %v291, %v265
    %v298 = vmul.f32 %v292, %v250
    %v299 = vmul.f32 %v293, %v251
    %v300 = vmul.f32 %v294, %v252
    %v301 = vmul.f32 %v295, %v253
    %v302 = vmul.f32 %v296, %v254
    %v303 = vmul.f32 %v297, %v255
    %vm304 = vcmask 1041408
    %v305 = vsel %vm304, %v298, 0.0
    %v306 = vsel %vm304, %v299, 0.0
    %v307 = vadd.f32 %v305, %v306
    %v308 = vsel %vm304, %v300, 0.0
    %v309 = vadd.f32 %v307, %v308
    %v310 = vsel %vm304, %v301, 0.0
    %v311 = vsel %vm304, %v302, 0.0
    %v312 = vadd.f32 %v310, %v311
    %v313 = vsel %vm304, %v303, 0.0
    %v314 = vadd.f32 %v312, %v313
    %v315 = vsel %vm304, %v250, 0.0
    %v316 = vsel %vm304, %v251, 0.0
    %v317 = vadd.f32 %v315, %v316
    %v318 = vsel %vm304, %v252, 0.0
    %v319 = vadd.f32 %v317, %v318
    %v320 = vsel %vm304, %v253, 0.0
    %v321 = vsel %vm304, %v254, 0.0
    %v322 = vadd.f32 %v320, %v321
    %v323 = vsel %vm304, %v255, 0.0
    %v324 = vadd.f32 %v322, %v323
    %vm325 = vcmp.lt.f32.partialorder %v319, 0.01
    %vm326 = vcmp.lt.f32.partialorder %v324, 0.01
    %v327 = vsel %vm325, 1, 0
    %v328 = vsel %vm326, 1, 0
    %v329 = vcvt.s32.f32 %v327
    %v330 = vcvt.s32.f32 %v328
    %v331 = vld [vmem:[%s5] sm:$0x3]
    %v332 = vmul.f32 %v309, %v266
    %v333 = vmul.f32 %v314, %v267
    %v334 = vsel %vm304, %v332, 0.0
    %v335 = vsel %vm304, %v333, 0.0
    %v336 = vadd.f32 %v334, %v335
    %v337 = vadd.f32 %v331, %v336
    %338 = vst [vmem:[%s5] sm:$0x3] %v337
    %s339 = scalar_lea.vmem %s5, 2
    %v340 = vld [vmem:[%s339] sm:$0x3]
    %v341 = vmul.f32 %v268, %v329
    %v342 = vmul.f32 %v269, %v330
    %v343 = vmul.f32 %v341, %v266
    %v344 = vmul.f32 %v342, %v267
    %v345 = vsel %vm304, %v343, 0.0
    %v346 = vsel %vm304, %v344, 0.0
    %v347 = vadd.f32 %v345, %v346
    %v348 = vadd.f32 %v340, %v347
    %349 = vst [vmem:[%s339] sm:$0x3] %v348
    %s350 = scalar_lea.vmem %s5, 4
    %v351 = vld [vmem:[%s350] sm:$0x3]
    %v352 = vsel %vm304, %v319, 0.0
    %v353 = vsel %vm304, %v324, 0.0
    %v354 = vadd.f32 %v352, %v353
    %v355 = vadd.f32 %v351, %v354
    %356 = vst [vmem:[%s350] sm:$0x3] %v355
    %s357 = scalar_lea.vmem %s5, 6
    %v358 = vld [vmem:[%s357] sm:$0x3]
    %v359 = vsel %vm304, %v329, 0.0
    %v360 = vsel %vm304, %v330, 0.0
    %v361 = vadd.f32 %v359, %v360
    %v362 = vadd.f32 %v358, %v361
    %363 = vst [vmem:[%s357] sm:$0x3] %v362
    %s364 = scalar_lea.vmem %s5, 8
    %v365 = vld [vmem:[%s364] sm:$0x3]
    %v366 = vsel %vm304, %v266, 0.0
    %v367 = vsel %vm304, %v267, 0.0
    %v368 = vadd.f32 %v366, %v367
    %v369 = vadd.f32 %v365, %v368
    %370 = vst [vmem:[%s364] sm:$0x3] %v369
    // Predicated region
    $region108: #{improved_multi_uncertainty_l1_loss.1} parent=1 // pred_check
      _
    $region109: #{improved_multi_uncertainty_l1_loss.1} parent=1 // pred_check_branch
      %372 = sbr.rel (0) target = $region111
    $region110: #{improved_multi_uncertainty_l1_loss.1} parent=1 // pred_region
      _
    $region111: #{improved_multi_uncertainty_l1_loss.1} parent=1 // pred_fallthru
      _
    // Predicated region
    $region112: #{improved_multi_uncertainty_l1_loss.1} parent=1 // pred_check
      _
    $region113: #{improved_multi_uncertainty_l1_loss.1} parent=1 // pred_check_branch
      %374 = sbr.rel (0) target = $region115
    $region114: #{improved_multi_uncertainty_l1_loss.1} parent=1 // pred_region
      _
    $region115: #{improved_multi_uncertainty_l1_loss.1} parent=1 // pred_fallthru
      _

</llo_original>
